<compile_context>
chip_gen: v7x
topology: tpu7x:2x2x1
jax: 0.10.0
libtpu: 0.0.40
codegen_flags: <defaults>
</compile_context>

<pallas_src>
import jax
import jax.numpy as jnp
from jax.experimental import pallas as pl
from jax.experimental.pallas import tpu as pltpu

EPS = 1e-5


# ----------------------------------------------------------------------------
# Pallas kernel: spatial-attention map for one block of fused (N*H*W) positions.
#   x_ref : (T, C, LB)      input positions (lane-dense last axis)
#   w_ref : (2C+1, C)       rows: [W1a (C) ; W1b (C) ; w2 (1)]   (BN folded)
#   b_ref : (C+1, 1)        rows: [b1 (C) ; b2 (1)]              (BN folded)
#   o_ref : (1, LB)         sigmoid attention per position
# ----------------------------------------------------------------------------
def spatial_kernel(x_ref, w_ref, b_ref, o_ref):
    T = x_ref.shape[0]
    C = x_ref.shape[1]

    # mean / max over T as a first-axis accumulation (keeps vreg pressure low).
    x0 = x_ref[0]                       # (C, LB)
    acc_sum = x0
    acc_max = x0
    for t in range(1, T):               # T is small & static
        xt = x_ref[t]
        acc_sum = acc_sum + xt
        acc_max = jnp.maximum(acc_max, xt)
    x_avg = acc_sum * (1.0 / T)         # (C, LB)

    W = w_ref[...]                      # (2C+1, C)
    B = b_ref[...]                      # (C+1, 1)
    w1a = W[:C, :]                      # (C, C)  conv1 weight, avg half (BN folded)
    w1b = W[C:2 * C, :]                 # (C, C)  conv1 weight, max half (BN folded)
    w2 = W[2 * C:2 * C + 1, :]          # (1, C)  conv2 weight
    b1 = B[:C, :]                       # (C, 1)  conv1 bias (BN folded)
    b2 = B[C:C + 1, :]                  # (1, 1)  conv2 bias

    # Conv1x1(2C->C) on cat([avg, max]) == W1a@avg + W1b@max  (no concat buffer)
    h = (jnp.dot(w1a, x_avg, preferred_element_type=jnp.float32)
         + jnp.dot(w1b, acc_max, preferred_element_type=jnp.float32)
         + b1)                          # (C, LB)   BN already folded in
    h = jnp.maximum(h, 0.0)             # ReLU

    att = jax.nn.sigmoid(
        jnp.dot(w2, h, preferred_element_type=jnp.float32) + b2)   # (1, LB)
    o_ref[...] = att


# ----------------------------------------------------------------------------
# Host-side parameter prep: fold eval-mode BN into conv1, pack into 2 slabs.
# ----------------------------------------------------------------------------
def _fold_and_pack_params(params, C):
    w1 = params["w1"]                       # (C, 2C)
    b1 = params["b1"]                       # (C,)
    gamma, beta, mean, var = params["bn"]   # each (C,)
    w2 = params["w2"]                       # (1, C)
    b2 = params["b2"]                       # (1,)

    scale = gamma / jnp.sqrt(var + EPS)
    w1f = w1 * scale[:, None]
    b1f = (b1 - mean) * scale + beta

    wslab = jnp.concatenate([w1f[:, :C], w1f[:, C:], w2], axis=0)      # (2C+1, C)
    bslab = jnp.concatenate([b1f[:, None], b2[:, None]], axis=0)       # (C+1, 1)
    return wslab.astype(jnp.float32), bslab.astype(jnp.float32)


def _pick_samples_per_block(n, hw, per_sample_bytes, budget_bytes=2 << 20):
    # Largest divisor of n whose block fits the budget; a partial block must
    # keep the lane dim a multiple of 128.
    candidates = [nb for nb in range(1, n + 1)
                  if n % nb == 0 and (nb == n or (nb * hw) % 128 == 0)]
    fitting = [nb for nb in candidates if nb * per_sample_bytes <= budget_bytes]
    return max(fitting) if fitting else min(candidates)


# ----------------------------------------------------------------------------
# Wrapper
# ----------------------------------------------------------------------------
def spatial_forward(x5, params):
    """x5: (N, C, T, H, W) float32 -> (N, C, T, H, W) broadcast attention map."""
    N, C, T, H, W = x5.shape
    HW = H * W
    L = N * HW

    # Lane-dense relayout: (T, C, N*H*W). Wrapper-side layout plumbing only.
    xk = jnp.transpose(x5, (2, 1, 0, 3, 4)).reshape(T, C, L)

    wslab, bslab = _fold_and_pack_params(params, C)

    per_sample_bytes = T * C * HW * 4
    nb = _pick_samples_per_block(N, HW, per_sample_bytes)
    LB = nb * HW
    grid = (L // LB,)

    att = pl.pallas_call(
        spatial_kernel,
        out_shape=jax.ShapeDtypeStruct((1, L), jnp.float32),
        grid_spec=pltpu.PrefetchScalarGridSpec(
            num_scalar_prefetch=0,
            grid=grid,
            in_specs=[
                pl.BlockSpec((T, C, LB), lambda i: (0, 0, i)),
                pl.BlockSpec(wslab.shape, lambda i: (0, 0)),
                pl.BlockSpec(bslab.shape, lambda i: (0, 0)),
            ],
            out_specs=pl.BlockSpec((1, LB), lambda i: (0, i)),
        ),
        compiler_params=pltpu.CompilerParams(
            dimension_semantics=("parallel",)),
    )(xk, wslab, bslab)

    # unsqueeze(2).expand_as(x): pure broadcast (PyTorch returns a view).
    att = att.reshape(N, 1, 1, H, W)
    return jnp.broadcast_to(att, (N, C, T, H, W))


# ----------------------------------------------------------------------------
# Pure-JAX reference (mirrors the PyTorch forward, eval-mode BN)
# ----------------------------------------------------------------------------
def reference_forward(x5, params):
    N, C, T, H, W = x5.shape
    x_avg = jnp.mean(x5, axis=2)                               # (N, C, H, W)
    x_max = jnp.max(x5, axis=2)                                # (N, C, H, W)
    xf = jnp.concatenate([x_avg, x_max], axis=1)               # (N, 2C, H, W)

    h = jnp.einsum("oc,nchw->nohw", params["w1"], xf) \
        + params["b1"][None, :, None, None]                    # (N, C, H, W)
    gamma, beta, mean, var = params["bn"]
    h = gamma[None, :, None, None] * (h - mean[None, :, None, None]) \
        / jnp.sqrt(var[None, :, None, None] + EPS) + beta[None, :, None, None]
    h = jnp.maximum(h, 0.0)
    att = jax.nn.sigmoid(
        jnp.einsum("oc,nchw->nohw", params["w2"], h)
        + params["b2"][None, :, None, None])                   # (N, 1, H, W)
    att = att[:, :, None, :, :]                                # unsqueeze(2)
    return jnp.broadcast_to(att, (N, C, T, H, W))


# ----------------------------------------------------------------------------
# Deterministic parameter init
# ----------------------------------------------------------------------------
def init_params(key, C):
    ks = jax.random.split(key, 8)

    def w(k, shape, s=0.3):
        return (s * jax.random.normal(k, shape)).astype(jnp.float32)

    gamma = (0.5 + jax.random.uniform(ks[2], (C,))).astype(jnp.float32)
    beta = (0.1 * jax.random.normal(ks[3], (C,))).astype(jnp.float32)
    mean = (0.1 * jax.random.normal(ks[4], (C,))).astype(jnp.float32)
    var = (0.5 + jax.random.uniform(ks[5], (C,))).astype(jnp.float32)

    return {
        # Conv2d(2C, C, 1) -> BN2d(C) -> ReLU -> Conv2d(C, 1, 1)
        "w1": w(ks[0], (C, 2 * C)),
        "b1": w(ks[1], (C,)),
        "bn": jnp.stack([gamma, beta, mean, var]),
        "w2": w(ks[6], (1, C)),
        "b2": w(ks[7], (1,)),
    }


if __name__ == "__main__":
    N, C, T, H, W = 2, 16, 8, 16, 16          # in_channel = 16, spatial 16x16, T = 8
    key = jax.random.PRNGKey(0)
    kx, kp = jax.random.split(key)

    x = jax.random.normal(kx, (N, C, T, H, W), dtype=jnp.float32)
    params = init_params(kp, C)

    out = jax.block_until_ready(spatial_forward(x, params))
    ref = reference_forward(x, params)

    assert out.shape == ref.shape == (N, C, T, H, W)
    err = jnp.max(jnp.abs(out - ref))
    assert jnp.allclose(out, ref, rtol=1e-4, atol=1e-4), f"max abs err {err}"

    print("KERNEL_OK")
</pallas_src>

<mosaic_0001>
module attributes {stable_mosaic.version = 11 : i64} {
  func.func @spatial_kernel(%arg0: i32, %arg1: memref<8x16x512xf32, #tpu.memory_space<vmem>>, %arg2: memref<33x16xf32, #tpu.memory_space<vmem>>, %arg3: memref<17x1xf32, #tpu.memory_space<vmem>>, %arg4: memref<1x512xf32, #tpu.memory_space<vmem>>) attributes {dimension_semantics = [#tpu.dimension_semantics<parallel>], iteration_bounds = array<i64: 1>, scalar_prefetch = 0 : i64, scratch_operands = 0 : i64, tpu.core_type = #tpu.core_type<tc>, window_params = [{transform_indices = @transform_0, window_bounds = array<i64: 8, 16, 512>}, {pipeline_mode = #tpu.pipeline_mode<synchronous>, transform_indices = @transform_1, window_bounds = array<i64: 33, 16>}, {pipeline_mode = #tpu.pipeline_mode<synchronous>, transform_indices = @transform_2, window_bounds = array<i64: 17, 1>}, {transform_indices = @transform_3, window_bounds = array<i64: 1, 512>}]} {
    %c0 = arith.constant 0 : index
    %c0_0 = arith.constant 0 : index
    %c0_1 = arith.constant 0 : index
    %0 = vector.load %arg1[%c0, %c0_0, %c0_1] : memref<8x16x512xf32, #tpu.memory_space<vmem>>, vector<1x16x512xf32>
    %1 = vector.shape_cast %0 : vector<1x16x512xf32> to vector<16x512xf32>
    %c1 = arith.constant 1 : index
    %c0_2 = arith.constant 0 : index
    %c0_3 = arith.constant 0 : index
    %2 = vector.load %arg1[%c1, %c0_2, %c0_3] : memref<8x16x512xf32, #tpu.memory_space<vmem>>, vector<1x16x512xf32>
    %3 = vector.shape_cast %2 : vector<1x16x512xf32> to vector<16x512xf32>
    %4 = arith.addf %1, %3 : vector<16x512xf32>
    %5 = arith.maximumf %1, %3 : vector<16x512xf32>
    %c2 = arith.constant 2 : index
    %c0_4 = arith.constant 0 : index
    %c0_5 = arith.constant 0 : index
    %6 = vector.load %arg1[%c2, %c0_4, %c0_5] : memref<8x16x512xf32, #tpu.memory_space<vmem>>, vector<1x16x512xf32>
    %7 = vector.shape_cast %6 : vector<1x16x512xf32> to vector<16x512xf32>
    %8 = arith.addf %4, %7 : vector<16x512xf32>
    %9 = arith.maximumf %5, %7 : vector<16x512xf32>
    %c3 = arith.constant 3 : index
    %c0_6 = arith.constant 0 : index
    %c0_7 = arith.constant 0 : index
    %10 = vector.load %arg1[%c3, %c0_6, %c0_7] : memref<8x16x512xf32, #tpu.memory_space<vmem>>, vector<1x16x512xf32>
    %11 = vector.shape_cast %10 : vector<1x16x512xf32> to vector<16x512xf32>
    %12 = arith.addf %8, %11 : vector<16x512xf32>
    %13 = arith.maximumf %9, %11 : vector<16x512xf32>
    %c4 = arith.constant 4 : index
    %c0_8 = arith.constant 0 : index
    %c0_9 = arith.constant 0 : index
    %14 = vector.load %arg1[%c4, %c0_8, %c0_9] : memref<8x16x512xf32, #tpu.memory_space<vmem>>, vector<1x16x512xf32>
    %15 = vector.shape_cast %14 : vector<1x16x512xf32> to vector<16x512xf32>
    %16 = arith.addf %12, %15 : vector<16x512xf32>
    %17 = arith.maximumf %13, %15 : vector<16x512xf32>
    %c5 = arith.constant 5 : index
    %c0_10 = arith.constant 0 : index
    %c0_11 = arith.constant 0 : index
    %18 = vector.load %arg1[%c5, %c0_10, %c0_11] : memref<8x16x512xf32, #tpu.memory_space<vmem>>, vector<1x16x512xf32>
    %19 = vector.shape_cast %18 : vector<1x16x512xf32> to vector<16x512xf32>
    %20 = arith.addf %16, %19 : vector<16x512xf32>
    %21 = arith.maximumf %17, %19 : vector<16x512xf32>
    %c6 = arith.constant 6 : index
    %c0_12 = arith.constant 0 : index
    %c0_13 = arith.constant 0 : index
    %22 = vector.load %arg1[%c6, %c0_12, %c0_13] : memref<8x16x512xf32, #tpu.memory_space<vmem>>, vector<1x16x512xf32>
    %23 = vector.shape_cast %22 : vector<1x16x512xf32> to vector<16x512xf32>
    %24 = arith.addf %20, %23 : vector<16x512xf32>
    %25 = arith.maximumf %21, %23 : vector<16x512xf32>
    %c7 = arith.constant 7 : index
    %c0_14 = arith.constant 0 : index
    %c0_15 = arith.constant 0 : index
    %26 = vector.load %arg1[%c7, %c0_14, %c0_15] : memref<8x16x512xf32, #tpu.memory_space<vmem>>, vector<1x16x512xf32>
    %27 = vector.shape_cast %26 : vector<1x16x512xf32> to vector<16x512xf32>
    %28 = arith.addf %24, %27 : vector<16x512xf32>
    %29 = arith.maximumf %25, %27 : vector<16x512xf32>
    %cst = arith.constant 1.250000e-01 : f32
    %30 = vector.broadcast %cst : f32 to vector<16x512xf32>
    %31 = arith.mulf %28, %30 : vector<16x512xf32>
    %c0_16 = arith.constant 0 : index
    %c0_17 = arith.constant 0 : index
    %32 = vector.load %arg2[%c0_16, %c0_17] : memref<33x16xf32, #tpu.memory_space<vmem>>, vector<33x16xf32>
    %c0_18 = arith.constant 0 : index
    %c0_19 = arith.constant 0 : index
    %33 = vector.load %arg3[%c0_18, %c0_19] : memref<17x1xf32, #tpu.memory_space<vmem>>, vector<17x1xf32>
    %34 = vector.extract_strided_slice %32 {offsets = [0, 0], sizes = [16, 16], strides = [1, 1]} : vector<33x16xf32> to vector<16x16xf32>
    %35 = vector.extract_strided_slice %32 {offsets = [16, 0], sizes = [16, 16], strides = [1, 1]} : vector<33x16xf32> to vector<16x16xf32>
    %36 = vector.extract_strided_slice %32 {offsets = [32, 0], sizes = [1, 16], strides = [1, 1]} : vector<33x16xf32> to vector<1x16xf32>
    %37 = vector.extract_strided_slice %33 {offsets = [0, 0], sizes = [16, 1], strides = [1, 1]} : vector<17x1xf32> to vector<16x1xf32>
    %38 = vector.extract_strided_slice %33 {offsets = [16, 0], sizes = [1, 1], strides = [1, 1]} : vector<17x1xf32> to vector<1x1xf32>
    %cst_20 = arith.constant dense<0.000000e+00> : vector<16x512xf32>
    %39 = tpu.matmul %34, %31, %cst_20 {dimension_numbers = #tpu.dot_dimension_numbers<[1], [0], [0], [1], [0, 0, 1, 1], [], []>} : vector<16x16xf32>, vector<16x512xf32>, vector<16x512xf32> -> vector<16x512xf32>
    %cst_21 = arith.constant dense<0.000000e+00> : vector<16x512xf32>
    %40 = tpu.matmul %35, %29, %cst_21 {dimension_numbers = #tpu.dot_dimension_numbers<[1], [0], [0], [1], [0, 0, 1, 1], [], []>} : vector<16x16xf32>, vector<16x512xf32>, vector<16x512xf32> -> vector<16x512xf32>
    %41 = arith.addf %39, %40 : vector<16x512xf32>
    %42 = vector.broadcast %37 : vector<16x1xf32> to vector<16x512xf32>
    %43 = arith.addf %41, %42 : vector<16x512xf32>
    %cst_22 = arith.constant 0.000000e+00 : f32
    %44 = vector.broadcast %cst_22 : f32 to vector<16x512xf32>
    %45 = arith.maximumf %43, %44 : vector<16x512xf32>
    %cst_23 = arith.constant dense<0.000000e+00> : vector<1x512xf32>
    %46 = tpu.matmul %36, %45, %cst_23 {dimension_numbers = #tpu.dot_dimension_numbers<[1], [0], [0], [1], [0, 0, 1, 1], [], []>} : vector<1x16xf32>, vector<16x512xf32>, vector<1x512xf32> -> vector<1x512xf32>
    %47 = vector.broadcast %38 : vector<1x1xf32> to vector<1x512xf32>
    %48 = arith.addf %46, %47 : vector<1x512xf32>
    %49 = arith.negf %48 : vector<1x512xf32>
    %50 = math.exp %49 : vector<1x512xf32>
    %cst_24 = arith.constant 1.000000e+00 : f32
    %51 = vector.broadcast %cst_24 : f32 to vector<1x512xf32>
    %52 = arith.addf %51, %50 : vector<1x512xf32>
    %53 = arith.divf %51, %52 : vector<1x512xf32>
    %c0_25 = arith.constant 0 : index
    %c0_26 = arith.constant 0 : index
    %54 = vector.load %arg4[%c0_25, %c0_26] : memref<1x512xf32, #tpu.memory_space<vmem>>, vector<1x512xf32>
    tpu.vector_store %arg4[%c0_25, %c0_26], %53 {strides = array<i32>} : memref<1x512xf32, #tpu.memory_space<vmem>>, vector<1x512xf32>,
    return
  }
  func.func @transform_0(%arg0: i32) -> (i32, i32, i32) {
    %c0_i32 = arith.constant 0 : i32
    %c0_i32_0 = arith.constant 0 : i32
    %c0_i32_1 = arith.constant 0 : i32
    return %c0_i32, %c0_i32_0, %arg0 : i32, i32, i32
  }
  func.func @transform_1(%arg0: i32) -> (i32, i32) {
    %c0_i32 = arith.constant 0 : i32
    %c0_i32_0 = arith.constant 0 : i32
    %c0_i32_1 = arith.constant 0 : i32
    return %c0_i32, %c0_i32_0 : i32, i32
  }
  func.func @transform_2(%arg0: i32) -> (i32, i32) {
    %c0_i32 = arith.constant 0 : i32
    %c0_i32_0 = arith.constant 0 : i32
    %c0_i32_1 = arith.constant 0 : i32
    return %c0_i32, %c0_i32_0 : i32, i32
  }
  func.func @transform_3(%arg0: i32) -> (i32, i32) {
    %c0_i32 = arith.constant 0 : i32
    %c0_i32_0 = arith.constant 0 : i32
    return %c0_i32, %arg0 : i32, i32
  }
}

</mosaic_0001>

<llo_original>
// kernel: tpu_custom_call.1
$region0: #{tpu_custom_call.1}
  #allocation0 [shape = 'u32[]', space=smem, size = 0x4, offset = 0x4, fixed_abs, tag = 'smem constant byte address 0x4 - core index']
  #allocation1 [shape = 'u32[144,128]{1,0:T(1,128)}', space=vmem, size = 0x12000, scoped, tag = 'internal scratch']
  %s0 = inlined_call_operand.hbm [shape: f32[8,16,512], index: 0, kind: input, shape index: {}]
  %s1 = inlined_call_operand.vmem [shape: f32[33,16], index: 1, kind: input, shape index: {}]
  %s2 = inlined_call_operand.vmem [shape: f32[17,1], index: 2, kind: input, shape index: {}]
  %s3 = inlined_call_operand.hbm [shape: f32[1,512], index: 3, kind: output, shape index: {}]
  %s4 = sld [smem:[#allocation0]]
  $region26: #{tpu_custom_call.1} parent=0
    _
  %s6 = ssub.s32 1, %s4
  %s7 = scalar_select 0, %s6, %s4
  $region1: #{tpu_custom_call.1} parent=0
    #allocation2 [shape = 'u8[262144]{0}', space=vmem, size = 0x40000, scoped, tag = 'input window, operand 0, single buffered']
    #allocation3 [shape = 's32[1]{0}', space=sflag, size = 0x4, scoped, tag = 'scoped memory for tpu_custom_call.1']
    #allocation4 [shape = 's32[1]{0}', space=sflag, size = 0x4, scoped, tag = 'scoped memory for tpu_custom_call.1']
    #allocation5 [shape = 'u8[2048]{0}', space=vmem, size = 0x800, scoped, tag = 'output window, operand 0, single buffered']
    %8 = vsyncpa [#allocation3], 0
    %9 = vsyncpa [#allocation4], 0
    // Predicated region
    $region2: #{tpu_custom_call.1} parent=1 // pred_check
      _
    $region3: #{tpu_custom_call.1} parent=1 // pred_check_branch
      %11 = sbr.rel (0) target = $region5
    $region4: #{tpu_custom_call.1} parent=1 // pred_region
      %s13 = ssub.s32 8192, 8192
      %14 = vsyncadd [#allocation3], %s13
      %s15 = sshll.u32 [#allocation2], 4
      %s16 = int_to_ptr.vmem [resolvable:$true] %s15
      %21 = dma.hbm_to_vmem [thread:$0]  %s0, 8192, %s16, [#allocation3], 512, 512, 32
    $region5: #{tpu_custom_call.1} parent=1 // pred_fallthru
      _
    // Predicated region
    $region6: #{tpu_custom_call.1} parent=1 // pred_check
      _
    $region7: #{tpu_custom_call.1} parent=1 // pred_check_branch
      %23 = sbr.rel (0) target = $region9
    $region8: #{tpu_custom_call.1} parent=1 // pred_region
      _
    $region9: #{tpu_custom_call.1} parent=1 // pred_fallthru
      _
    // Predicated region
    $region10: #{tpu_custom_call.1} parent=1 // pred_check
      _
    $region11: #{tpu_custom_call.1} parent=1 // pred_check_branch
      %25 = sbr.rel (0) target = $region13
    $region12: #{tpu_custom_call.1} parent=1 // pred_region
      _
    $region13: #{tpu_custom_call.1} parent=1 // pred_fallthru
      _
    // Predicated region
    $region14: #{tpu_custom_call.1} parent=1 // pred_check
      _
    $region15: #{tpu_custom_call.1} parent=1 // pred_check_branch
      %27 = sbr.rel (0) target = $region17
    $region16: #{tpu_custom_call.1} parent=1 // pred_region
      %28 = dma.done [#allocation3], 8192
    $region17: #{tpu_custom_call.1} parent=1 // pred_fallthru
      _
    %v29 = vld [vmem:[#allocation2] sm:$0xff]
    %v30 = vld [vmem:[#allocation2 + $0x8] sm:$0xff]
    %v31 = vld [vmem:[#allocation2 + $0x10] sm:$0xff]
    %v32 = vld [vmem:[#allocation2 + $0x18] sm:$0xff]
    %v33 = vld [vmem:[#allocation2 + $0x20] sm:$0xff]
    %v34 = vld [vmem:[#allocation2 + $0x28] sm:$0xff]
    %v35 = vld [vmem:[#allocation2 + $0x30] sm:$0xff]
    %v36 = vld [vmem:[#allocation2 + $0x38] sm:$0xff]
    %s37 = scalar_lea.vmem [#allocation2], 64
    %v38 = vld [vmem:[%s37] sm:$0xff]
    %v39 = vld [vmem:[%s37 + $0x8] sm:$0xff]
    %v40 = vld [vmem:[%s37 + $0x10] sm:$0xff]
    %v41 = vld [vmem:[%s37 + $0x18] sm:$0xff]
    %v42 = vld [vmem:[%s37 + $0x20] sm:$0xff]
    %v43 = vld [vmem:[%s37 + $0x28] sm:$0xff]
    %v44 = vld [vmem:[%s37 + $0x30] sm:$0xff]
    %v45 = vld [vmem:[%s37 + $0x38] sm:$0xff]
    %v46 = vadd.f32 %v29, %v38
    %v47 = vadd.f32 %v30, %v39
    %v48 = vadd.f32 %v31, %v40
    %v49 = vadd.f32 %v32, %v41
    %v50 = vadd.f32 %v33, %v42
    %v51 = vadd.f32 %v34, %v43
    %v52 = vadd.f32 %v35, %v44
    %v53 = vadd.f32 %v36, %v45
    %v54 = vmax.f32 %v29, %v38
    %v55 = vmax.f32 %v30, %v39
    %v56 = vmax.f32 %v31, %v40
    %v57 = vmax.f32 %v32, %v41
    %v58 = vmax.f32 %v33, %v42
    %v59 = vmax.f32 %v34, %v43
    %v60 = vmax.f32 %v35, %v44
    %v61 = vmax.f32 %v36, %v45
    %s62 = scalar_lea.vmem [#allocation2], 128
    %v63 = vld [vmem:[%s62] sm:$0xff]
    %v64 = vld [vmem:[%s62 + $0x8] sm:$0xff]
    %v65 = vld [vmem:[%s62 + $0x10] sm:$0xff]
    %v66 = vld [vmem:[%s62 + $0x18] sm:$0xff]
    %v67 = vld [vmem:[%s62 + $0x20] sm:$0xff]
    %v68 = vld [vmem:[%s62 + $0x28] sm:$0xff]
    %v69 = vld [vmem:[%s62 + $0x30] sm:$0xff]
    %v70 = vld [vmem:[%s62 + $0x38] sm:$0xff]
    %v71 = vadd.f32 %v46, %v63
    %v72 = vadd.f32 %v47, %v64
    %v73 = vadd.f32 %v48, %v65
    %v74 = vadd.f32 %v49, %v66
    %v75 = vadd.f32 %v50, %v67
    %v76 = vadd.f32 %v51, %v68
    %v77 = vadd.f32 %v52, %v69
    %v78 = vadd.f32 %v53, %v70
    %v79 = vmax.f32 %v54, %v63
    %v80 = vmax.f32 %v55, %v64
    %v81 = vmax.f32 %v56, %v65
    %v82 = vmax.f32 %v57, %v66
    %v83 = vmax.f32 %v58, %v67
    %v84 = vmax.f32 %v59, %v68
    %v85 = vmax.f32 %v60, %v69
    %v86 = vmax.f32 %v61, %v70
    %s87 = scalar_lea.vmem [#allocation2], 192
    %v88 = vld [vmem:[%s87] sm:$0xff]
    %v89 = vld [vmem:[%s87 + $0x8] sm:$0xff]
    %v90 = vld [vmem:[%s87 + $0x10] sm:$0xff]
    %v91 = vld [vmem:[%s87 + $0x18] sm:$0xff]
    %v92 = vld [vmem:[%s87 + $0x20] sm:$0xff]
    %v93 = vld [vmem:[%s87 + $0x28] sm:$0xff]
    %v94 = vld [vmem:[%s87 + $0x30] sm:$0xff]
    %v95 = vld [vmem:[%s87 + $0x38] sm:$0xff]
    %v96 = vadd.f32 %v71, %v88
    %v97 = vadd.f32 %v72, %v89
    %v98 = vadd.f32 %v73, %v90
    %v99 = vadd.f32 %v74, %v91
    %v100 = vadd.f32 %v75, %v92
    %v101 = vadd.f32 %v76, %v93
    %v102 = vadd.f32 %v77, %v94
    %v103 = vadd.f32 %v78, %v95
    %v104 = vmax.f32 %v79, %v88
    %v105 = vmax.f32 %v80, %v89
    %v106 = vmax.f32 %v81, %v90
    %v107 = vmax.f32 %v82, %v91
    %v108 = vmax.f32 %v83, %v92
    %v109 = vmax.f32 %v84, %v93
    %v110 = vmax.f32 %v85, %v94
    %v111 = vmax.f32 %v86, %v95
    %s112 = scalar_lea.vmem [#allocation2], 256
    %v113 = vld [vmem:[%s112] sm:$0xff]
    %v114 = vld [vmem:[%s112 + $0x8] sm:$0xff]
    %v115 = vld [vmem:[%s112 + $0x10] sm:$0xff]
    %v116 = vld [vmem:[%s112 + $0x18] sm:$0xff]
    %v117 = vld [vmem:[%s112 + $0x20] sm:$0xff]
    %v118 = vld [vmem:[%s112 + $0x28] sm:$0xff]
    %v119 = vld [vmem:[%s112 + $0x30] sm:$0xff]
    %v120 = vld [vmem:[%s112 + $0x38] sm:$0xff]
    %v121 = vadd.f32 %v96, %v113
    %v122 = vadd.f32 %v97, %v114
    %v123 = vadd.f32 %v98, %v115
    %v124 = vadd.f32 %v99, %v116
    %v125 = vadd.f32 %v100, %v117
    %v126 = vadd.f32 %v101, %v118
    %v127 = vadd.f32 %v102, %v119
    %v128 = vadd.f32 %v103, %v120
    %v129 = vmax.f32 %v104, %v113
    %v130 = vmax.f32 %v105, %v114
    %v131 = vmax.f32 %v106, %v115
    %v132 = vmax.f32 %v107, %v116
    %v133 = vmax.f32 %v108, %v117
    %v134 = vmax.f32 %v109, %v118
    %v135 = vmax.f32 %v110, %v119
    %v136 = vmax.f32 %v111, %v120
    %s137 = scalar_lea.vmem [#allocation2], 320
    %v138 = vld [vmem:[%s137] sm:$0xff]
    %v139 = vld [vmem:[%s137 + $0x8] sm:$0xff]
    %v140 = vld [vmem:[%s137 + $0x10] sm:$0xff]
    %v141 = vld [vmem:[%s137 + $0x18] sm:$0xff]
    %v142 = vld [vmem:[%s137 + $0x20] sm:$0xff]
    %v143 = vld [vmem:[%s137 + $0x28] sm:$0xff]
    %v144 = vld [vmem:[%s137 + $0x30] sm:$0xff]
    %v145 = vld [vmem:[%s137 + $0x38] sm:$0xff]
    %v146 = vadd.f32 %v121, %v138
    %v147 = vadd.f32 %v122, %v139
    %v148 = vadd.f32 %v123, %v140
    %v149 = vadd.f32 %v124, %v141
    %v150 = vadd.f32 %v125, %v142
    %v151 = vadd.f32 %v126, %v143
    %v152 = vadd.f32 %v127, %v144
    %v153 = vadd.f32 %v128, %v145
    %v154 = vmax.f32 %v129, %v138
    %v155 = vmax.f32 %v130, %v139
    %v156 = vmax.f32 %v131, %v140
    %v157 = vmax.f32 %v132, %v141
    %v158 = vmax.f32 %v133, %v142
    %v159 = vmax.f32 %v134, %v143
    %v160 = vmax.f32 %v135, %v144
    %v161 = vmax.f32 %v136, %v145
    %s162 = scalar_lea.vmem [#allocation2], 384
    %v163 = vld [vmem:[%s162] sm:$0xff]
    %v164 = vld [vmem:[%s162 + $0x8] sm:$0xff]
    %v165 = vld [vmem:[%s162 + $0x10] sm:$0xff]
    %v166 = vld [vmem:[%s162 + $0x18] sm:$0xff]
    %v167 = vld [vmem:[%s162 + $0x20] sm:$0xff]
    %v168 = vld [vmem:[%s162 + $0x28] sm:$0xff]
    %v169 = vld [vmem:[%s162 + $0x30] sm:$0xff]
    %v170 = vld [vmem:[%s162 + $0x38] sm:$0xff]
    %v171 = vadd.f32 %v146, %v163
    %v172 = vadd.f32 %v147, %v164
    %v173 = vadd.f32 %v148, %v165
    %v174 = vadd.f32 %v149, %v166
    %v175 = vadd.f32 %v150, %v167
    %v176 = vadd.f32 %v151, %v168
    %v177 = vadd.f32 %v152, %v169
    %v178 = vadd.f32 %v153, %v170
    %v179 = vmax.f32 %v154, %v163
    %v180 = vmax.f32 %v155, %v164
    %v181 = vmax.f32 %v156, %v165
    %v182 = vmax.f32 %v157, %v166
    %v183 = vmax.f32 %v158, %v167
    %v184 = vmax.f32 %v159, %v168
    %v185 = vmax.f32 %v160, %v169
    %v186 = vmax.f32 %v161, %v170
    %s187 = scalar_lea.vmem [#allocation2], 448
    %v188 = vld [vmem:[%s187] sm:$0xff]
    %v189 = vld [vmem:[%s187 + $0x8] sm:$0xff]
    %v190 = vld [vmem:[%s187 + $0x10] sm:$0xff]
    %v191 = vld [vmem:[%s187 + $0x18] sm:$0xff]
    %v192 = vld [vmem:[%s187 + $0x20] sm:$0xff]
    %v193 = vld [vmem:[%s187 + $0x28] sm:$0xff]
    %v194 = vld [vmem:[%s187 + $0x30] sm:$0xff]
    %v195 = vld [vmem:[%s187 + $0x38] sm:$0xff]
    %v196 = vadd.f32 %v171, %v188
    %v197 = vadd.f32 %v172, %v189
    %v198 = vadd.f32 %v173, %v190
    %v199 = vadd.f32 %v174, %v191
    %v200 = vadd.f32 %v175, %v192
    %v201 = vadd.f32 %v176, %v193
    %v202 = vadd.f32 %v177, %v194
    %v203 = vadd.f32 %v178, %v195
    %v204 = vmax.f32 %v179, %v188
    %v205 = vmax.f32 %v180, %v189
    %v206 = vmax.f32 %v181, %v190
    %v207 = vmax.f32 %v182, %v191
    %v208 = vmax.f32 %v183, %v192
    %v209 = vmax.f32 %v184, %v193
    %v210 = vmax.f32 %v185, %v194
    %v211 = vmax.f32 %v186, %v195
    %v212 = vmul.f32 %v196, 0.125
    %v213 = vmul.f32 %v197, 0.125
    %v214 = vmul.f32 %v198, 0.125
    %v215 = vmul.f32 %v199, 0.125
    %v216 = vmul.f32 %v200, 0.125
    %v217 = vmul.f32 %v201, 0.125
    %v218 = vmul.f32 %v202, 0.125
    %v219 = vmul.f32 %v203, 0.125
    %v220 = vld [vmem:[%s1] sm:$0xff]
    %v221 = vld [vmem:[%s1 + $0x8] sm:$0xff]
    %v222 = vld [vmem:[%s1 + $0x10] sm:$0xff]
    %v223 = vld [vmem:[%s1 + $0x18] sm:$0xff]
    %v224 = vld [vmem:[%s1 + $0x20] sm:$0x1]
    %v225 = vld [vmem:[%s2] sm:$0xff]
    %v226 = vld [vmem:[%s2 + $0x8] sm:$0xff]
    %v227 = vld [vmem:[%s2 + $0x10] sm:$0x1]
    %vm228 = vcmask 130048
    %v230 = vsel %vm228, %v222, 0
    %v233 = vsel %vm228, %v223, 0
    %235 = vmatprep.subr.mxu0 %v205
    %236 = vmatpush1.msra.mxu0 %v204
    %237 = vmatprep.subr.mxu0 %v209
    %238 = vmatpush1.msra.mxu0 %v208
    %239 = vmatprep.subr.mxu0 0.0
    %240 = vmatpush1.msra.mxu0 0.0
    %241 = vmatprep.subr.mxu0 0.0
    %242 = vmatpush1.msra.mxu0 0.0
    %243 = vmatprep.subr.mxu0 0.0
    %244 = vmatpush1.msra.mxu0 0.0
    %245 = vmatprep.subr.mxu0 0.0
    %246 = vmatpush1.msra.mxu0 0.0
    %247 = vmatprep.subr.mxu0 0.0
    %248 = vmatpush1.msra.mxu0 0.0
    %249 = vmatprep.subr.mxu0 0.0
    %250 = vmatpush1.msra.mxu0 0.0
    %251 = vmatprep.subr.mxu0 0.0
    %252 = vmatpush1.msra.mxu0 0.0
    %253 = vmatprep.subr.mxu0 0.0
    %254 = vmatpush1.msra.mxu0 0.0
    %255 = vmatprep.subr.mxu0 0.0
    %256 = vmatpush1.msra.mxu0 0.0
    %257 = vmatprep.subr.mxu0 0.0
    %258 = vmatpush1.msra.mxu0 0.0
    %259 = vmatprep.subr.mxu0 0.0
    %260 = vmatpush1.msra.mxu0 0.0
    %261 = vmatprep.subr.mxu0 0.0
    %262 = vmatpush1.msra.mxu0 0.0
    %263 = vmatprep.subr.mxu0 0.0
    %264 = vmatpush1.msra.mxu0 0.0
    %265 = vmatprep.subr.mxu0 0.0
    %266 = vmatpush1.msra.mxu0 0.0
    %267 = vmatprep.subr.mxu0 0.0
    %268 = vmatpush1.msra.mxu0 0.0
    %269 = vmatprep.subr.mxu0 0.0
    %270 = vmatpush1.msra.mxu0 0.0
    %271 = vmatprep.subr.mxu0 0.0
    %272 = vmatpush1.msra.mxu0 0.0
    %273 = vmatprep.subr.mxu0 0.0
    %274 = vmatpush1.msra.mxu0 0.0
    %275 = vmatprep.subr.mxu0 0.0
    %276 = vmatpush1.msra.mxu0 0.0
    %277 = vmatprep.subr.mxu0 0.0
    %278 = vmatpush1.msra.mxu0 0.0
    %279 = vmatprep.subr.mxu0 0.0
    %280 = vmatpush1.msra.mxu0 0.0
    %281 = vmatprep.subr.mxu0 0.0
    %282 = vmatpush1.msra.mxu0 0.0
    %283 = vmatprep.subr.mxu0 0.0
    %284 = vmatpush1.msra.mxu0 0.0
    %285 = vmatprep.subr.mxu0 0.0
    %286 = vmatpush1.msra.mxu0 0.0
    %287 = vmatprep.subr.mxu0 0.0
    %288 = vmatpush1.msra.mxu0 0.0
    %289 = vmatprep.subr.mxu0 0.0
    %290 = vmatpush1.msra.mxu0 0.0
    %291 = vmatprep.subr.mxu0 0.0
    %292 = vmatpush1.msra.mxu0 0.0
    %293 = vmatprep.subr.mxu0 0.0
    %294 = vmatpush1.msra.mxu0 0.0
    %295 = vmatprep.subr.mxu0 0.0
    %296 = vmatpush1.msra.mxu0 0.0
    %297 = vmatprep.subr.mxu0 0.0
    %298 = vmatpush1.msra.mxu0 0.0
    %299 = vmatprep.mubr.f32.mxu0 0.0
    %300 = vmatmul.mubr.f32.gmra.mrb[0].mxu0 %v230
    %v301 = vpop.f32.mrb[0].mxu0
    %v302 = vadd.f32 0.0, %v301
    %v303 = vpop.f32.mrb[0].mxu0
    %v304 = vadd.f32 0.0, %v303
    %305 = vmatprep.mubr.f32.mxu0 0.0
    %306 = vmatmul.mubr.f32.gmra.mrb[0].mxu0 %v233
    %v307 = vpop.f32.mrb[0].mxu0
    %v308 = vadd.f32 0.0, %v307
    %v309 = vpop.f32.mrb[0].mxu0
    %v310 = vadd.f32 0.0, %v309
    %311 = vdwg.mxu0
    %312 = vmatprep.subr.mxu0 %v207
    %313 = vmatpush1.msra.mxu0 %v206
    %314 = vmatprep.subr.mxu0 %v211
    %315 = vmatpush1.msra.mxu0 %v210
    %316 = vmatprep.subr.mxu0 0.0
    %317 = vmatpush1.msra.mxu0 0.0
    %318 = vmatprep.subr.mxu0 0.0
    %319 = vmatpush1.msra.mxu0 0.0
    %320 = vmatprep.subr.mxu0 0.0
    %321 = vmatpush1.msra.mxu0 0.0
    %322 = vmatprep.subr.mxu0 0.0
    %323 = vmatpush1.msra.mxu0 0.0
    %324 = vmatprep.subr.mxu0 0.0
    %325 = vmatpush1.msra.mxu0 0.0
    %326 = vmatprep.subr.mxu0 0.0
    %327 = vmatpush1.msra.mxu0 0.0
    %328 = vmatprep.subr.mxu0 0.0
    %329 = vmatpush1.msra.mxu0 0.0
    %330 = vmatprep.subr.mxu0 0.0
    %331 = vmatpush1.msra.mxu0 0.0
    %332 = vmatprep.subr.mxu0 0.0
    %333 = vmatpush1.msra.mxu0 0.0
    %334 = vmatprep.subr.mxu0 0.0
    %335 = vmatpush1.msra.mxu0 0.0
    %336 = vmatprep.subr.mxu0 0.0
    %337 = vmatpush1.msra.mxu0 0.0
    %338 = vmatprep.subr.mxu0 0.0
    %339 = vmatpush1.msra.mxu0 0.0
    %340 = vmatprep.subr.mxu0 0.0
    %341 = vmatpush1.msra.mxu0 0.0
    %342 = vmatprep.subr.mxu0 0.0
    %343 = vmatpush1.msra.mxu0 0.0
    %344 = vmatprep.subr.mxu0 0.0
    %345 = vmatpush1.msra.mxu0 0.0
    %346 = vmatprep.subr.mxu0 0.0
    %347 = vmatpush1.msra.mxu0 0.0
    %348 = vmatprep.subr.mxu0 0.0
    %349 = vmatpush1.msra.mxu0 0.0
    %350 = vmatprep.subr.mxu0 0.0
    %351 = vmatpush1.msra.mxu0 0.0
    %352 = vmatprep.subr.mxu0 0.0
    %353 = vmatpush1.msra.mxu0 0.0
    %354 = vmatprep.subr.mxu0 0.0
    %355 = vmatpush1.msra.mxu0 0.0
    %356 = vmatprep.subr.mxu0 0.0
    %357 = vmatpush1.msra.mxu0 0.0
    %358 = vmatprep.subr.mxu0 0.0
    %359 = vmatpush1.msra.mxu0 0.0
    %360 = vmatprep.subr.mxu0 0.0
    %361 = vmatpush1.msra.mxu0 0.0
    %362 = vmatprep.subr.mxu0 0.0
    %363 = vmatpush1.msra.mxu0 0.0
    %364 = vmatprep.subr.mxu0 0.0
    %365 = vmatpush1.msra.mxu0 0.0
    %366 = vmatprep.subr.mxu0 0.0
    %367 = vmatpush1.msra.mxu0 0.0
    %368 = vmatprep.subr.mxu0 0.0
    %369 = vmatpush1.msra.mxu0 0.0
    %370 = vmatprep.subr.mxu0 0.0
    %371 = vmatpush1.msra.mxu0 0.0
    %372 = vmatprep.subr.mxu0 0.0
    %373 = vmatpush1.msra.mxu0 0.0
    %374 = vmatprep.subr.mxu0 0.0
    %375 = vmatpush1.msra.mxu0 0.0
    %376 = vmatprep.mubr.f32.mxu0 0.0
    %377 = vmatmul.mubr.f32.gmra.mrb[0].mxu0 %v230
    %v378 = vpop.f32.mrb[0].mxu0
    %v379 = vadd.f32 0.0, %v378
    %v380 = vpop.f32.mrb[0].mxu0
    %v381 = vadd.f32 0.0, %v380
    %382 = vmatprep.mubr.f32.mxu0 0.0
    %383 = vmatmul.mubr.f32.gmra.mrb[0].mxu0 %v233
    %v384 = vpop.f32.mrb[0].mxu0
    %v385 = vadd.f32 0.0, %v384
    %v386 = vpop.f32.mrb[0].mxu0
    %v387 = vadd.f32 0.0, %v386
    %388 = vdwg.mxu0
    %v390 = vsel %vm228, %v220, 0
    %v393 = vsel %vm228, %v221, 0
    %395 = vmatprep.subr.mxu0 %v213
    %396 = vmatpush1.msra.mxu0 %v212
    %397 = vmatprep.subr.mxu0 %v217
    %398 = vmatpush1.msra.mxu0 %v216
    %399 = vmatprep.subr.mxu0 0.0
    %400 = vmatpush1.msra.mxu0 0.0
    %401 = vmatprep.subr.mxu0 0.0
    %402 = vmatpush1.msra.mxu0 0.0
    %403 = vmatprep.subr.mxu0 0.0
    %404 = vmatpush1.msra.mxu0 0.0
    %405 = vmatprep.subr.mxu0 0.0
    %406 = vmatpush1.msra.mxu0 0.0
    %407 = vmatprep.subr.mxu0 0.0
    %408 = vmatpush1.msra.mxu0 0.0
    %409 = vmatprep.subr.mxu0 0.0
    %410 = vmatpush1.msra.mxu0 0.0
    %411 = vmatprep.subr.mxu0 0.0
    %412 = vmatpush1.msra.mxu0 0.0
    %413 = vmatprep.subr.mxu0 0.0
    %414 = vmatpush1.msra.mxu0 0.0
    %415 = vmatprep.subr.mxu0 0.0
    %416 = vmatpush1.msra.mxu0 0.0
    %417 = vmatprep.subr.mxu0 0.0
    %418 = vmatpush1.msra.mxu0 0.0
    %419 = vmatprep.subr.mxu0 0.0
    %420 = vmatpush1.msra.mxu0 0.0
    %421 = vmatprep.subr.mxu0 0.0
    %422 = vmatpush1.msra.mxu0 0.0
    %423 = vmatprep.subr.mxu0 0.0
    %424 = vmatpush1.msra.mxu0 0.0
    %425 = vmatprep.subr.mxu0 0.0
    %426 = vmatpush1.msra.mxu0 0.0
    %427 = vmatprep.subr.mxu0 0.0
    %428 = vmatpush1.msra.mxu0 0.0
    %429 = vmatprep.subr.mxu0 0.0
    %430 = vmatpush1.msra.mxu0 0.0
    %431 = vmatprep.subr.mxu0 0.0
    %432 = vmatpush1.msra.mxu0 0.0
    %433 = vmatprep.subr.mxu0 0.0
    %434 = vmatpush1.msra.mxu0 0.0
    %435 = vmatprep.subr.mxu0 0.0
    %436 = vmatpush1.msra.mxu0 0.0
    %437 = vmatprep.subr.mxu0 0.0
    %438 = vmatpush1.msra.mxu0 0.0
    %439 = vmatprep.subr.mxu0 0.0
    %440 = vmatpush1.msra.mxu0 0.0
    %441 = vmatprep.subr.mxu0 0.0
    %442 = vmatpush1.msra.mxu0 0.0
    %443 = vmatprep.subr.mxu0 0.0
    %444 = vmatpush1.msra.mxu0 0.0
    %445 = vmatprep.subr.mxu0 0.0
    %446 = vmatpush1.msra.mxu0 0.0
    %447 = vmatprep.subr.mxu0 0.0
    %448 = vmatpush1.msra.mxu0 0.0
    %449 = vmatprep.subr.mxu0 0.0
    %450 = vmatpush1.msra.mxu0 0.0
    %451 = vmatprep.subr.mxu0 0.0
    %452 = vmatpush1.msra.mxu0 0.0
    %453 = vmatprep.subr.mxu0 0.0
    %454 = vmatpush1.msra.mxu0 0.0
    %455 = vmatprep.subr.mxu0 0.0
    %456 = vmatpush1.msra.mxu0 0.0
    %457 = vmatprep.subr.mxu0 0.0
    %458 = vmatpush1.msra.mxu0 0.0
    %459 = vmatprep.mubr.f32.mxu0 0.0
    %460 = vmatmul.mubr.f32.gmra.mrb[0].mxu0 %v390
    %v461 = vpop.f32.mrb[0].mxu0
    %v462 = vadd.f32 %v302, %v461
    %v463 = vpop.f32.mrb[0].mxu0
    %v464 = vadd.f32 %v304, %v463
    %465 = vmatprep.mubr.f32.mxu0 0.0
    %466 = vmatmul.mubr.f32.gmra.mrb[0].mxu0 %v393
    %v467 = vpop.f32.mrb[0].mxu0
    %v468 = vadd.f32 %v308, %v467
    %v469 = vpop.f32.mrb[0].mxu0
    %v470 = vadd.f32 %v310, %v469
    %471 = vdwg.mxu0
    %472 = vmatprep.subr.mxu0 %v215
    %473 = vmatpush1.msra.mxu0 %v214
    %474 = vmatprep.subr.mxu0 %v219
    %475 = vmatpush1.msra.mxu0 %v218
    %476 = vmatprep.subr.mxu0 0.0
    %477 = vmatpush1.msra.mxu0 0.0
    %478 = vmatprep.subr.mxu0 0.0
    %479 = vmatpush1.msra.mxu0 0.0
    %480 = vmatprep.subr.mxu0 0.0
    %481 = vmatpush1.msra.mxu0 0.0
    %482 = vmatprep.subr.mxu0 0.0
    %483 = vmatpush1.msra.mxu0 0.0
    %484 = vmatprep.subr.mxu0 0.0
    %485 = vmatpush1.msra.mxu0 0.0
    %486 = vmatprep.subr.mxu0 0.0
    %487 = vmatpush1.msra.mxu0 0.0
    %488 = vmatprep.subr.mxu0 0.0
    %489 = vmatpush1.msra.mxu0 0.0
    %490 = vmatprep.subr.mxu0 0.0
    %491 = vmatpush1.msra.mxu0 0.0
    %492 = vmatprep.subr.mxu0 0.0
    %493 = vmatpush1.msra.mxu0 0.0
    %494 = vmatprep.subr.mxu0 0.0
    %495 = vmatpush1.msra.mxu0 0.0
    %496 = vmatprep.subr.mxu0 0.0
    %497 = vmatpush1.msra.mxu0 0.0
    %498 = vmatprep.subr.mxu0 0.0
    %499 = vmatpush1.msra.mxu0 0.0
    %500 = vmatprep.subr.mxu0 0.0
    %501 = vmatpush1.msra.mxu0 0.0
    %502 = vmatprep.subr.mxu0 0.0
    %503 = vmatpush1.msra.mxu0 0.0
    %504 = vmatprep.subr.mxu0 0.0
    %505 = vmatpush1.msra.mxu0 0.0
    %506 = vmatprep.subr.mxu0 0.0
    %507 = vmatpush1.msra.mxu0 0.0
    %508 = vmatprep.subr.mxu0 0.0
    %509 = vmatpush1.msra.mxu0 0.0
    %510 = vmatprep.subr.mxu0 0.0
    %511 = vmatpush1.msra.mxu0 0.0
    %512 = vmatprep.subr.mxu0 0.0
    %513 = vmatpush1.msra.mxu0 0.0
    %514 = vmatprep.subr.mxu0 0.0
    %515 = vmatpush1.msra.mxu0 0.0
    %516 = vmatprep.subr.mxu0 0.0
    %517 = vmatpush1.msra.mxu0 0.0
    %518 = vmatprep.subr.mxu0 0.0
    %519 = vmatpush1.msra.mxu0 0.0
    %520 = vmatprep.subr.mxu0 0.0
    %521 = vmatpush1.msra.mxu0 0.0
    %522 = vmatprep.subr.mxu0 0.0
    %523 = vmatpush1.msra.mxu0 0.0
    %524 = vmatprep.subr.mxu0 0.0
    %525 = vmatpush1.msra.mxu0 0.0
    %526 = vmatprep.subr.mxu0 0.0
    %527 = vmatpush1.msra.mxu0 0.0
    %528 = vmatprep.subr.mxu0 0.0
    %529 = vmatpush1.msra.mxu0 0.0
    %530 = vmatprep.subr.mxu0 0.0
    %531 = vmatpush1.msra.mxu0 0.0
    %532 = vmatprep.subr.mxu0 0.0
    %533 = vmatpush1.msra.mxu0 0.0
    %534 = vmatprep.subr.mxu0 0.0
    %535 = vmatpush1.msra.mxu0 0.0
    %536 = vmatprep.mubr.f32.mxu0 0.0
    %537 = vmatmul.mubr.f32.gmra.mrb[0].mxu0 %v390
    %v538 = vpop.f32.mrb[0].mxu0
    %v539 = vadd.f32 %v379, %v538
    %v540 = vpop.f32.mrb[0].mxu0
    %v541 = vadd.f32 %v381, %v540
    %542 = vmatprep.mubr.f32.mxu0 0.0
    %543 = vmatmul.mubr.f32.gmra.mrb[0].mxu0 %v393
    %v544 = vpop.f32.mrb[0].mxu0
    %v545 = vadd.f32 %v385, %v544
    %v546 = vpop.f32.mrb[0].mxu0
    %v547 = vadd.f32 %v387, %v546
    %548 = vdwg.mxu0
    %550 = vset.pattern.permute.xlu0 0
    %551 = vperm.xlu0 %550, %v225
    %v552 = vpop.permute.xlu0 %551
    %555 = vset.pattern.permute.xlu0 0
    %556 = vperm.xlu0 %555, %v226
    %v557 = vpop.permute.xlu0 %556
    %v559 = vadd.f32 %v462, %v552
    %v560 = vadd.f32 %v464, %v552
    %v561 = vadd.f32 %v539, %v552
    %v562 = vadd.f32 %v541, %v552
    %v563 = vadd.f32 %v468, %v557
    %v564 = vadd.f32 %v470, %v557
    %v565 = vadd.f32 %v545, %v557
    %v566 = vadd.f32 %v547, %v557
    %v567 = vmax.f32 %v559, 0.0
    %v568 = vmax.f32 %v560, 0.0
    %v569 = vmax.f32 %v561, 0.0
    %v570 = vmax.f32 %v562, 0.0
    %v571 = vmax.f32 %v563, 0.0
    %v572 = vmax.f32 %v564, 0.0
    %v573 = vmax.f32 %v565, 0.0
    %v574 = vmax.f32 %v566, 0.0
    %576 = vset.pattern.permute.xlu0 0
    %577 = vperm.xlu0 %576, %v227
    %v578 = vpop.permute.xlu0 %577
    %v581 = vsel %vm228, %v224, 0
    %583 = vmatprep.subr.mxu0 %v568
    %584 = vmatpush1.msra.mxu0 %v567
    %585 = vmatprep.subr.mxu0 %v572
    %586 = vmatpush1.msra.mxu0 %v571
    %587 = vmatprep.subr.mxu0 0.0
    %588 = vmatpush1.msra.mxu0 0.0
    %589 = vmatprep.subr.mxu0 0.0
    %590 = vmatpush1.msra.mxu0 0.0
    %591 = vmatprep.subr.mxu0 0.0
    %592 = vmatpush1.msra.mxu0 0.0
    %593 = vmatprep.subr.mxu0 0.0
    %594 = vmatpush1.msra.mxu0 0.0
    %595 = vmatprep.subr.mxu0 0.0
    %596 = vmatpush1.msra.mxu0 0.0
    %597 = vmatprep.subr.mxu0 0.0
    %598 = vmatpush1.msra.mxu0 0.0
    %599 = vmatprep.subr.mxu0 0.0
    %600 = vmatpush1.msra.mxu0 0.0
    %601 = vmatprep.subr.mxu0 0.0
    %602 = vmatpush1.msra.mxu0 0.0
    %603 = vmatprep.subr.mxu0 0.0
    %604 = vmatpush1.msra.mxu0 0.0
    %605 = vmatprep.subr.mxu0 0.0
    %606 = vmatpush1.msra.mxu0 0.0
    %607 = vmatprep.subr.mxu0 0.0
    %608 = vmatpush1.msra.mxu0 0.0
    %609 = vmatprep.subr.mxu0 0.0
    %610 = vmatpush1.msra.mxu0 0.0
    %611 = vmatprep.subr.mxu0 0.0
    %612 = vmatpush1.msra.mxu0 0.0
    %613 = vmatprep.subr.mxu0 0.0
    %614 = vmatpush1.msra.mxu0 0.0
    %615 = vmatprep.subr.mxu0 0.0
    %616 = vmatpush1.msra.mxu0 0.0
    %617 = vmatprep.subr.mxu0 0.0
    %618 = vmatpush1.msra.mxu0 0.0
    %619 = vmatprep.subr.mxu0 0.0
    %620 = vmatpush1.msra.mxu0 0.0
    %621 = vmatprep.subr.mxu0 0.0
    %622 = vmatpush1.msra.mxu0 0.0
    %623 = vmatprep.subr.mxu0 0.0
    %624 = vmatpush1.msra.mxu0 0.0
    %625 = vmatprep.subr.mxu0 0.0
    %626 = vmatpush1.msra.mxu0 0.0
    %627 = vmatprep.subr.mxu0 0.0
    %628 = vmatpush1.msra.mxu0 0.0
    %629 = vmatprep.subr.mxu0 0.0
    %630 = vmatpush1.msra.mxu0 0.0
    %631 = vmatprep.subr.mxu0 0.0
    %632 = vmatpush1.msra.mxu0 0.0
    %633 = vmatprep.subr.mxu0 0.0
    %634 = vmatpush1.msra.mxu0 0.0
    %635 = vmatprep.subr.mxu0 0.0
    %636 = vmatpush1.msra.mxu0 0.0
    %637 = vmatprep.subr.mxu0 0.0
    %638 = vmatpush1.msra.mxu0 0.0
    %639 = vmatprep.subr.mxu0 0.0
    %640 = vmatpush1.msra.mxu0 0.0
    %641 = vmatprep.subr.mxu0 0.0
    %642 = vmatpush1.msra.mxu0 0.0
    %643 = vmatprep.subr.mxu0 0.0
    %644 = vmatpush1.msra.mxu0 0.0
    %645 = vmatprep.subr.mxu0 0.0
    %646 = vmatpush1.msra.mxu0 0.0
    %647 = vmatprep.mubr.f32.mxu0 0.0
    %648 = vmatmul.mubr.f32.gmra.mrb[0].mxu0 %v581
    %v649 = vpop.f32.mrb[0].mxu0
    %v650 = vadd.f32 %v578, %v649
    %v651 = vpop.f32.mrb[0].mxu0
    %v652 = vadd.f32 %v578, %v651
    %653 = vdwg.mxu0
    %654 = vmatprep.subr.mxu0 %v570
    %655 = vmatpush1.msra.mxu0 %v569
    %656 = vmatprep.subr.mxu0 %v574
    %657 = vmatpush1.msra.mxu0 %v573
    %658 = vmatprep.subr.mxu0 0.0
    %659 = vmatpush1.msra.mxu0 0.0
    %660 = vmatprep.subr.mxu0 0.0
    %661 = vmatpush1.msra.mxu0 0.0
    %662 = vmatprep.subr.mxu0 0.0
    %663 = vmatpush1.msra.mxu0 0.0
    %664 = vmatprep.subr.mxu0 0.0
    %665 = vmatpush1.msra.mxu0 0.0
    %666 = vmatprep.subr.mxu0 0.0
    %667 = vmatpush1.msra.mxu0 0.0
    %668 = vmatprep.subr.mxu0 0.0
    %669 = vmatpush1.msra.mxu0 0.0
    %670 = vmatprep.subr.mxu0 0.0
    %671 = vmatpush1.msra.mxu0 0.0
    %672 = vmatprep.subr.mxu0 0.0
    %673 = vmatpush1.msra.mxu0 0.0
    %674 = vmatprep.subr.mxu0 0.0
    %675 = vmatpush1.msra.mxu0 0.0
    %676 = vmatprep.subr.mxu0 0.0
    %677 = vmatpush1.msra.mxu0 0.0
    %678 = vmatprep.subr.mxu0 0.0
    %679 = vmatpush1.msra.mxu0 0.0
    %680 = vmatprep.subr.mxu0 0.0
    %681 = vmatpush1.msra.mxu0 0.0
    %682 = vmatprep.subr.mxu0 0.0
    %683 = vmatpush1.msra.mxu0 0.0
    %684 = vmatprep.subr.mxu0 0.0
    %685 = vmatpush1.msra.mxu0 0.0
    %686 = vmatprep.subr.mxu0 0.0
    %687 = vmatpush1.msra.mxu0 0.0
    %688 = vmatprep.subr.mxu0 0.0
    %689 = vmatpush1.msra.mxu0 0.0
    %690 = vmatprep.subr.mxu0 0.0
    %691 = vmatpush1.msra.mxu0 0.0
    %692 = vmatprep.subr.mxu0 0.0
    %693 = vmatpush1.msra.mxu0 0.0
    %694 = vmatprep.subr.mxu0 0.0
    %695 = vmatpush1.msra.mxu0 0.0
    %696 = vmatprep.subr.mxu0 0.0
    %697 = vmatpush1.msra.mxu0 0.0
    %698 = vmatprep.subr.mxu0 0.0
    %699 = vmatpush1.msra.mxu0 0.0
    %700 = vmatprep.subr.mxu0 0.0
    %701 = vmatpush1.msra.mxu0 0.0
    %702 = vmatprep.subr.mxu0 0.0
    %703 = vmatpush1.msra.mxu0 0.0
    %704 = vmatprep.subr.mxu0 0.0
    %705 = vmatpush1.msra.mxu0 0.0
    %706 = vmatprep.subr.mxu0 0.0
    %707 = vmatpush1.msra.mxu0 0.0
    %708 = vmatprep.subr.mxu0 0.0
    %709 = vmatpush1.msra.mxu0 0.0
    %710 = vmatprep.subr.mxu0 0.0
    %711 = vmatpush1.msra.mxu0 0.0
    %712 = vmatprep.subr.mxu0 0.0
    %713 = vmatpush1.msra.mxu0 0.0
    %714 = vmatprep.subr.mxu0 0.0
    %715 = vmatpush1.msra.mxu0 0.0
    %716 = vmatprep.subr.mxu0 0.0
    %717 = vmatpush1.msra.mxu0 0.0
    %718 = vmatprep.mubr.f32.mxu0 0.0
    %719 = vmatmul.mubr.f32.gmra.mrb[0].mxu0 %v581
    %v720 = vpop.f32.mrb[0].mxu0
    %v721 = vadd.f32 %v578, %v720
    %v722 = vpop.f32.mrb[0].mxu0
    %v723 = vadd.f32 %v578, %v722
    %724 = vdwg.mxu0
    %v725 = vxor.u32 %v650, 2147483648
    %v726 = vxor.u32 %v652, 2147483648
    %v727 = vxor.u32 %v721, 2147483648
    %v728 = vxor.u32 %v723, 2147483648
    %v729 = vmul.f32 %v725, 1.442695
    %v730 = vpow.pop %v729
    %v731 = vmul.f32 %v726, 1.442695
    %v732 = vpow.pop %v731
    %v733 = vmul.f32 %v727, 1.442695
    %v734 = vpow.pop %v733
    %v735 = vmul.f32 %v728, 1.442695
    %v736 = vpow.pop %v735
    %v737 = vadd.f32 %v730, 1.0
    %v738 = vadd.f32 %v732, 1.0
    %v739 = vadd.f32 %v734, 1.0
    %v740 = vadd.f32 %v736, 1.0
    %v741 = vrcp.pop %v737
    %v742 = vmul.f32 1.0, %v741
    %v743 = vrcp.pop %v738
    %v744 = vmul.f32 1.0, %v743
    %v745 = vrcp.pop %v739
    %v746 = vmul.f32 1.0, %v745
    %v747 = vrcp.pop %v740
    %v748 = vmul.f32 1.0, %v747
    %v753 = vcombine.low %v742, %v744
    %v754 = vcombine.low %v746, %v748
    %v756 = vunpack.c.l.s4 1966171168
    %v757 = vunpack.c.0.s8 %v756
    %v758 = vlaneseq
    %v759 = vshrl.u32 %v758, 7
    %v760 = vsub.s32 %v757, %v759
    %v761 = vrot.slane %v753, %v760
    %v763 = vunpack.c.l.s4 1966171168
    %v764 = vunpack.c.0.s8 %v763
    %v765 = vlaneseq
    %v766 = vshrl.u32 %v765, 7
    %v767 = vsub.s32 %v764, %v766
    %v768 = vrot.slane %v754, %v767
    %v769 = vcombine.low %v761, %v768
    %v771 = vunpack.c.l.s4 1966171168
    %v772 = vunpack.c.0.s8 %v771
    %v773 = vlaneseq
    %v774 = vshrl.u32 %v773, 7
    %v775 = vsub.s32 %v772, %v774
    %v776 = vrot.slane %v769, %v775
    %v778 = vlaneseq
    %vm779 = vcmp.ge.s32.totalorder %v778, 0
    %vm780 = vcmp.lt.s32.totalorder %v778, 512
    %vm781 = vmand %vm779, %vm780
    %782 = vst.msk [vmem:[#allocation5] sm:$0xf] %vm781, %v776
    // Predicated region
    $region18: #{tpu_custom_call.1} parent=1 // pred_check
      _
    $region19: #{tpu_custom_call.1} parent=1 // pred_check_branch
      %784 = sbr.rel (0) target = $region21
    $region20: #{tpu_custom_call.1} parent=1 // pred_region
      %s786 = ssub.s32 64, 64
      %787 = vsyncadd [#allocation4], %s786
      %s789 = sshll.u32 [#allocation5], 4
      %s790 = int_to_ptr.vmem [resolvable:$true] %s789
      %792 = dma.vmem_to_hbm [thread:$0]  %s790, 64, %s3, [#allocation4]
    $region21: #{tpu_custom_call.1} parent=1 // pred_fallthru
      _
    // Predicated region
    $region22: #{tpu_custom_call.1} parent=1 // pred_check
      _
    $region23: #{tpu_custom_call.1} parent=1 // pred_check_branch
      %794 = sbr.rel (0) target = $region25
    $region24: #{tpu_custom_call.1} parent=1 // pred_region
      %795 = dma.done [#allocation4], 64
    $region25: #{tpu_custom_call.1} parent=1 // pred_fallthru
      _
    %796 = vsyncpa [#allocation3], 1
    %797 = vsyncpa [#allocation4], 1

</llo_original>
